<compile_context>
chip_gen: v7x
topology: tpu7x:2x2x1
jax: 0.10.0
libtpu: 0.0.40
codegen_flags: <defaults>
</compile_context>

<pallas_src>
import functools

import jax
import jax.numpy as jnp
from jax.experimental import pallas as pl
from jax.experimental.pallas import tpu as pltpu

_LANES = 128  # TPU vreg lane width; pad num_classes up to this for dense stores


def _linear_kernel(x_ref, w_ref, b_ref, o_ref):
    # MXU matmul (bf16 in, f32 accumulate) + f32 broadcasted bias add.
    acc = jnp.dot(x_ref[...], w_ref[...], preferred_element_type=jnp.float32)
    o_ref[...] = (acc + b_ref[...]).astype(o_ref.dtype)


def prepare_params(weight, bias, *, param_dtype=jnp.bfloat16):
    """One-time parameter prep (do NOT redo per forward call).

    weight: [num_classes, input_size]  (PyTorch nn.Linear layout)
    bias:   [num_classes]
    Returns:
      w_t: [input_size, n_pad]  param_dtype, lane-padded to a multiple of 128
      b2d: [1, n_pad]           float32,    lane-padded
      num_classes: original (unpadded) class count
    """
    num_classes, in_sz = weight.shape
    n_pad = max(_LANES, pl.cdiv(num_classes, _LANES) * _LANES)

    w_t = jnp.zeros((in_sz, n_pad), dtype=param_dtype)
    w_t = w_t.at[:, :num_classes].set(jnp.asarray(weight, dtype=param_dtype).T)

    b2d = jnp.zeros((1, n_pad), dtype=jnp.float32)
    b2d = b2d.at[:, :num_classes].set(
        jnp.asarray(bias, dtype=jnp.float32).reshape(1, num_classes))
    return w_t, b2d, num_classes


@functools.partial(jax.jit, static_argnames=("num_classes", "tm"))
def logistic_regression_forward(x, w_t, b2d, num_classes, *, tm=1024):
    """
    x:   [B, input_size]           (any float dtype; cast to w_t.dtype for DMA)
    w_t: [input_size, n_pad]       pre-transposed / pre-padded weight
    b2d: [1, n_pad]                pre-padded f32 bias
    returns [B, num_classes] float32 logits (same semantics as nn.Linear)
    """
    B, in_sz = x.shape
    n_pad = w_t.shape[1]

    # bf16 input stream halves HBM bytes; accumulation stays f32 in-kernel.
    x_in = jnp.asarray(x, dtype=w_t.dtype)

    # Fixed batch tile, multiple of 8, never larger than the (padded) batch.
    tm = int(min(tm, max(8, ((B + 7) // 8) * 8)))
    tm = (tm // 8) * 8
    b_pad = pl.cdiv(B, tm) * tm
    if b_pad != B:
        x_in = jnp.pad(x_in, ((0, b_pad - B), (0, 0)))

    grid = (b_pad // tm,)

    # Scheduling hints: flops + bytes for this mem-bound kernel.
    bytes_accessed = (
        b_pad * in_sz * x_in.dtype.itemsize        # x stream
        + in_sz * n_pad * w_t.dtype.itemsize       # weight (VMEM-resident)
        + n_pad * 4                                # bias
        + b_pad * n_pad * 4                        # output
    )
    cost = pl.CostEstimate(
        flops=2 * b_pad * in_sz * n_pad,
        transcendentals=0,
        bytes_accessed=bytes_accessed,
    )

    out_padded = pl.pallas_call(
        _linear_kernel,
        out_shape=jax.ShapeDtypeStruct((b_pad, n_pad), jnp.float32),
        grid_spec=pltpu.PrefetchScalarGridSpec(
            num_scalar_prefetch=0,
            grid=grid,
            in_specs=[
                pl.BlockSpec((tm, in_sz), lambda i: (i, 0)),        # x tile (streamed)
                pl.BlockSpec((in_sz, n_pad), lambda i: (0, 0)),     # W^T (resident)
                pl.BlockSpec((1, n_pad), lambda i: (0, 0)),         # bias (resident)
            ],
            out_specs=pl.BlockSpec((tm, n_pad), lambda i: (i, 0)),  # lane-dense out
        ),
        compiler_params=pltpu.CompilerParams(
            dimension_semantics=("parallel",),     # batch axis: megacore-shardable
            vmem_limit_bytes=32 * 1024 * 1024,     # headroom for big tiles
        ),
        cost_estimate=cost,
    )(x_in, w_t, b2d)

    # Strip batch padding and lane padding outside the kernel.
    return out_padded[:B, :num_classes]


if __name__ == "__main__":
    # Deterministic synthetic parameters + input (no checkpoint load).
    input_size = 32
    num_classes = 8
    batch = 8

    key = jax.random.PRNGKey(0)
    kx, kw, kb, kx2 = jax.random.split(key, 4)

    x = jax.random.normal(kx, (batch, input_size), dtype=jnp.float32)
    bound = 1.0 / jnp.sqrt(jnp.float32(input_size))
    weight = jax.random.uniform(kw, (num_classes, input_size),
                                minval=-bound, maxval=bound, dtype=jnp.float32)
    bias = jax.random.uniform(kb, (num_classes,),
                              minval=-bound, maxval=bound, dtype=jnp.float32)

    # One-time parameter prep (transpose + bf16 cast + lane padding).
    w_t, b2d, n_cls = prepare_params(weight, bias)

    # --- small demo-shape check ---
    out = logistic_regression_forward(x, w_t, b2d, n_cls)
    out = jax.block_until_ready(out)
    ref = x @ weight.T + bias
    assert out.shape == (batch, num_classes)
    # bf16 input/weight stream -> loosened tolerance vs f32 reference.
    assert jnp.allclose(out, ref, atol=2e-2, rtol=2e-2), \
        float(jnp.max(jnp.abs(out - ref)))

    # --- larger-batch check: exercises the pipelined multi-tile path ---
    big_b = 2048 + 13  # non-multiple of the tile -> exercises batch padding
    xb = jax.random.normal(kx2, (big_b, input_size), dtype=jnp.float32)
    out_b = logistic_regression_forward(xb, w_t, b2d, n_cls, tm=512)
    out_b = jax.block_until_ready(out_b)
    ref_b = xb @ weight.T + bias
    assert out_b.shape == (big_b, num_classes)
    assert jnp.allclose(out_b, ref_b, atol=2e-2, rtol=2e-2), \
        float(jnp.max(jnp.abs(out_b - ref_b)))

    print("KERNEL_OK")
</pallas_src>

<mosaic_0001>
module attributes {stable_mosaic.version = 11 : i64} {
  func.func @_linear_kernel(%arg0: i32, %arg1: memref<8x32xbf16, #tpu.memory_space<vmem>>, %arg2: memref<32x128xbf16, #tpu.memory_space<vmem>>, %arg3: memref<1x128xf32, #tpu.memory_space<vmem>>, %arg4: memref<8x128xf32, #tpu.memory_space<vmem>>) attributes {dimension_semantics = [#tpu.dimension_semantics<parallel>], iteration_bounds = array<i64: 1>, scalar_prefetch = 0 : i64, scratch_operands = 0 : i64, tpu.core_type = #tpu.core_type<tc>, window_params = [{transform_indices = @transform_0, window_bounds = array<i64: 8, 32>}, {pipeline_mode = #tpu.pipeline_mode<synchronous>, transform_indices = @transform_1, window_bounds = array<i64: 32, 128>}, {pipeline_mode = #tpu.pipeline_mode<synchronous>, transform_indices = @transform_2, window_bounds = array<i64: 1, 128>}, {transform_indices = @transform_3, window_bounds = array<i64: 8, 128>}]} {
    %c0 = arith.constant 0 : index
    %c0_0 = arith.constant 0 : index
    %0 = vector.load %arg1[%c0, %c0_0] : memref<8x32xbf16, #tpu.memory_space<vmem>>, vector<8x32xbf16>
    %c0_1 = arith.constant 0 : index
    %c0_2 = arith.constant 0 : index
    %1 = vector.load %arg2[%c0_1, %c0_2] : memref<32x128xbf16, #tpu.memory_space<vmem>>, vector<32x128xbf16>
    %cst = arith.constant dense<0.000000e+00> : vector<8x128xf32>
    %2 = tpu.matmul %0, %1, %cst {dimension_numbers = #tpu.dot_dimension_numbers<[1], [0], [0], [1], [0, 0, 1, 1], [], []>} : vector<8x32xbf16>, vector<32x128xbf16>, vector<8x128xf32> -> vector<8x128xf32>
    %c0_3 = arith.constant 0 : index
    %c0_4 = arith.constant 0 : index
    %3 = vector.load %arg3[%c0_3, %c0_4] : memref<1x128xf32, #tpu.memory_space<vmem>>, vector<1x128xf32>
    %4 = vector.broadcast %3 : vector<1x128xf32> to vector<8x128xf32>
    %5 = arith.addf %2, %4 : vector<8x128xf32>
    %c0_5 = arith.constant 0 : index
    %c0_6 = arith.constant 0 : index
    %6 = vector.load %arg4[%c0_5, %c0_6] : memref<8x128xf32, #tpu.memory_space<vmem>>, vector<8x128xf32>
    tpu.vector_store %arg4[%c0_5, %c0_6], %5 {strides = array<i32>} : memref<8x128xf32, #tpu.memory_space<vmem>>, vector<8x128xf32>,
    return
  }
  func.func @transform_0(%arg0: i32) -> (i32, i32) {
    %c0_i32 = arith.constant 0 : i32
    %c0_i32_0 = arith.constant 0 : i32
    return %arg0, %c0_i32 : i32, i32
  }
  func.func @transform_1(%arg0: i32) -> (i32, i32) {
    %c0_i32 = arith.constant 0 : i32
    %c0_i32_0 = arith.constant 0 : i32
    %c0_i32_1 = arith.constant 0 : i32
    return %c0_i32, %c0_i32_0 : i32, i32
  }
  func.func @transform_2(%arg0: i32) -> (i32, i32) {
    %c0_i32 = arith.constant 0 : i32
    %c0_i32_0 = arith.constant 0 : i32
    %c0_i32_1 = arith.constant 0 : i32
    return %c0_i32, %c0_i32_0 : i32, i32
  }
  func.func @transform_3(%arg0: i32) -> (i32, i32) {
    %c0_i32 = arith.constant 0 : i32
    %c0_i32_0 = arith.constant 0 : i32
    return %arg0, %c0_i32 : i32, i32
  }
}

</mosaic_0001>

<llo_original>
// kernel: logistic_regression_forward.1
$region0: #{logistic_regression_forward.1}
  #allocation0 [shape = 'u32[]', space=smem, size = 0x4, offset = 0x4, fixed_abs, tag = 'smem constant byte address 0x4 - core index']
  #allocation1 [shape = 'u32[144,128]{1,0:T(1,128)}', space=vmem, size = 0x12000, scoped, tag = 'internal scratch']
  %s0 = inlined_call_operand.vmem [shape: bf16[8,32], index: 0, kind: input, shape index: {}]
  %s1 = inlined_call_operand.hbm [shape: bf16[32,128], index: 1, kind: input, shape index: {}]
  %s2 = inlined_call_operand.vmem [shape: f32[1,128], index: 2, kind: input, shape index: {}]
  %s3 = inlined_call_operand.hbm [shape: f32[8,128], index: 3, kind: output, shape index: {}]
  %s4 = sld [smem:[#allocation0]]
  $region26: #{logistic_regression_forward.1} parent=0
    _
  %s6 = ssub.s32 1, %s4
  %s7 = scalar_select 0, %s6, %s4
  $region1: #{logistic_regression_forward.1} parent=0
    #allocation2 [shape = 'u8[8192]{0}', space=vmem, size = 0x2000, scoped, tag = 'input window, operand 1, single buffered']
    #allocation3 [shape = 's32[1]{0}', space=sflag, size = 0x4, scoped, tag = 'scoped memory for logistic_regression_forward.1']
    #allocation4 [shape = 's32[1]{0}', space=sflag, size = 0x4, scoped, tag = 'scoped memory for logistic_regression_forward.1']
    #allocation5 [shape = 'u8[4096]{0}', space=vmem, size = 0x1000, scoped, tag = 'output window, operand 0, single buffered']
    %8 = vsyncpa [#allocation3], 0
    %9 = vsyncpa [#allocation4], 0
    // Predicated region
    $region2: #{logistic_regression_forward.1} parent=1 // pred_check
      _
    $region3: #{logistic_regression_forward.1} parent=1 // pred_check_branch
      %11 = sbr.rel (0) target = $region5
    $region4: #{logistic_regression_forward.1} parent=1 // pred_region
      _
    $region5: #{logistic_regression_forward.1} parent=1 // pred_fallthru
      _
    // Predicated region
    $region6: #{logistic_regression_forward.1} parent=1 // pred_check
      _
    $region7: #{logistic_regression_forward.1} parent=1 // pred_check_branch
      %13 = sbr.rel (0) target = $region9
    $region8: #{logistic_regression_forward.1} parent=1 // pred_region
      %s15 = ssub.s32 256, 256
      %16 = vsyncadd [#allocation3], %s15
      %s17 = sshll.u32 [#allocation2], 4
      %s18 = int_to_ptr.vmem [resolvable:$true] %s17
      %23 = dma.hbm_to_vmem [thread:$0]  %s1, 256, %s18, [#allocation3], 64, 64, 4
    $region9: #{logistic_regression_forward.1} parent=1 // pred_fallthru
      _
    // Predicated region
    $region10: #{logistic_regression_forward.1} parent=1 // pred_check
      _
    $region11: #{logistic_regression_forward.1} parent=1 // pred_check_branch
      %25 = sbr.rel (0) target = $region13
    $region12: #{logistic_regression_forward.1} parent=1 // pred_region
      _
    $region13: #{logistic_regression_forward.1} parent=1 // pred_fallthru
      _
    // Predicated region
    $region14: #{logistic_regression_forward.1} parent=1 // pred_check
      _
    $region15: #{logistic_regression_forward.1} parent=1 // pred_check_branch
      %27 = sbr.rel (0) target = $region17
    $region16: #{logistic_regression_forward.1} parent=1 // pred_region
      %28 = dma.done [#allocation3], 256
    $region17: #{logistic_regression_forward.1} parent=1 // pred_fallthru
      _
    %v30 = vld [vmem:[%s0] sm:$0xf]
    %v31 = vld [vmem:[#allocation2] sm:$0xf]
    %v32 = vld [vmem:[#allocation2 + $0x4] sm:$0xf]
    %v33 = vld [vmem:[#allocation2 + $0x8] sm:$0xf]
    %v34 = vld [vmem:[#allocation2 + $0xc] sm:$0xf]
    %v35 = vld [vmem:[%s2] sm:$0x1]
    %v37 = vlaneseq
    %v38 = vshrl.u32 %v37, 7
    %v39 = vsub.s32 0, %v38
    %v40 = vrot.slane %v35, %v39
    %v46 = vunpack.c.l.b16 %v31
    %v47 = vunpack.c.l.b16 %v32
    %v48 = vunpack.c.l.b16 %v33
    %v49 = vunpack.c.l.b16 %v34
    %v50 = vpack.c.b16 %v47, %v46
    %v51 = vpack.c.b16 %v49, %v48
    %vm54 = vcmask 261120
    %v56 = vsel %vm54, %v30, 0
    %58 = vmatprep.subr.bf16.mxu0 0
    %59 = vmatpush1.bf16.msra.mxu0 %v50
    %60 = vmatprep.subr.bf16.mxu0 0
    %61 = vmatpush1.bf16.msra.mxu0 %v51
    %62 = vmatprep.subr.bf16.mxu0 0
    %63 = vmatpush1.bf16.msra.mxu0 0
    %64 = vmatprep.subr.bf16.mxu0 0
    %65 = vmatpush1.bf16.msra.mxu0 0
    %66 = vmatprep.subr.bf16.mxu0 0
    %67 = vmatpush1.bf16.msra.mxu0 0
    %68 = vmatprep.subr.bf16.mxu0 0
    %69 = vmatpush1.bf16.msra.mxu0 0
    %70 = vmatprep.subr.bf16.mxu0 0
    %71 = vmatpush1.bf16.msra.mxu0 0
    %72 = vmatprep.subr.bf16.mxu0 0
    %73 = vmatpush1.bf16.msra.mxu0 0
    %74 = vmatprep.subr.bf16.mxu0 0
    %75 = vmatpush1.bf16.msra.mxu0 0
    %76 = vmatprep.subr.bf16.mxu0 0
    %77 = vmatpush1.bf16.msra.mxu0 0
    %78 = vmatprep.subr.bf16.mxu0 0
    %79 = vmatpush1.bf16.msra.mxu0 0
    %80 = vmatprep.subr.bf16.mxu0 0
    %81 = vmatpush1.bf16.msra.mxu0 0
    %82 = vmatprep.subr.bf16.mxu0 0
    %83 = vmatpush1.bf16.msra.mxu0 0
    %84 = vmatprep.subr.bf16.mxu0 0
    %85 = vmatpush1.bf16.msra.mxu0 0
    %86 = vmatprep.subr.bf16.mxu0 0
    %87 = vmatpush1.bf16.msra.mxu0 0
    %88 = vmatprep.subr.bf16.mxu0 0
    %89 = vmatpush1.bf16.msra.mxu0 0
    %90 = vmatprep.mubr.bf16.mxu0 0
    %91 = vmatmul.mubr.bf16.gmra.mrb[0].mxu0 %v56
    %v92 = vpop.f32.mrb[0].mxu0
    %v93 = vadd.f32 %v40, %v92
    %v94 = vpop.f32.mrb[0].mxu0
    %v95 = vpop.f32.mrb[0].mxu0
    %v96 = vpop.f32.mrb[0].mxu0
    %97 = vdwg.mxu0
    %98 = vst [vmem:[#allocation5] sm:$0xff] %v93
    // Predicated region
    $region18: #{logistic_regression_forward.1} parent=1 // pred_check
      _
    $region19: #{logistic_regression_forward.1} parent=1 // pred_check_branch
      %100 = sbr.rel (0) target = $region21
    $region20: #{logistic_regression_forward.1} parent=1 // pred_region
      %s102 = ssub.s32 128, 128
      %103 = vsyncadd [#allocation4], %s102
      %s105 = sshll.u32 [#allocation5], 4
      %s106 = int_to_ptr.vmem [resolvable:$true] %s105
      %108 = dma.vmem_to_hbm [thread:$0]  %s106, 128, %s3, [#allocation4]
    $region21: #{logistic_regression_forward.1} parent=1 // pred_fallthru
      _
    // Predicated region
    $region22: #{logistic_regression_forward.1} parent=1 // pred_check
      _
    $region23: #{logistic_regression_forward.1} parent=1 // pred_check_branch
      %110 = sbr.rel (0) target = $region25
    $region24: #{logistic_regression_forward.1} parent=1 // pred_region
      %111 = dma.done [#allocation4], 128
    $region25: #{logistic_regression_forward.1} parent=1 // pred_fallthru
      _
    %112 = vsyncpa [#allocation3], 1
    %113 = vsyncpa [#allocation4], 1

</llo_original>
